<compile_context>
chip_gen: v6e
topology: v6e:2x2x1
jax: 0.10.0
libtpu: 0.0.40
codegen_flags: <defaults>
</compile_context>

<pallas_src>
import jax
import jax.numpy as jnp
from jax.experimental import pallas as pl
from jax.experimental.pallas import tpu as pltpu

INPUT_DIM = 27
HIDDEN_DIM = 64
EMBEDDING_DIM = 32
FOLD = 4                   # batch rows folded into lanes: 4 * 32 = 128 output lanes
DEFAULT_TILE_R = 4096      # folded rows per grid step (= 16384 batch rows)


def _round_up(x, m):
    return ((x + m - 1) // m) * m


def _block_diag(w, n):
    """(K, N) -> (n*K, n*N) block-diagonal replication of w."""
    k, m = w.shape
    out = jnp.zeros((n * k, n * m), w.dtype)
    for j in range(n):
        out = out.at[j * k:(j + 1) * k, j * m:(j + 1) * m].set(w)
    return out


def embedding_net_kernel(x_ref, w1_ref, b1_ref, w2_ref, b2_ref, o_ref):
    # x_ref : (tile_r, 108) f32  -- 4 batch rows folded per folded row
    # w1_ref: (108, 256) bf16      b1_ref: (1, 256) f32
    # w2_ref: (256, 128) bf16      b2_ref: (1, 128) f32
    # o_ref : (tile_r, 128) f32  -- lane-dense output block (unmasked stores)
    x = x_ref[...].astype(jnp.bfloat16)                       # VPU cast, has slack
    h = jnp.dot(x, w1_ref[...], preferred_element_type=jnp.float32) + b1_ref[...]
    h = jnp.maximum(h, 0.0)
    out = jnp.dot(h.astype(jnp.bfloat16), w2_ref[...],
                  preferred_element_type=jnp.float32) + b2_ref[...]
    o_ref[...] = out.astype(o_ref.dtype)


@jax.jit
def embedding_net_forward(x, w1, b1, w2, b2):
    """x: (B, 27) f32; w1: (27, 64); b1: (1, 64); w2: (64, 32); b2: (1, 32)."""
    B = x.shape[0]

    # Pad batch to a multiple of FOLD*8 = 32 so the folded row dim is a
    # multiple of 8 sublanes.  No copy when B is already a multiple of 32.
    B_pad = _round_up(max(B, FOLD * 8), FOLD * 8)
    if B_pad != B:
        x = jnp.pad(x, ((0, B_pad - B), (0, 0)))

    R = B_pad // FOLD
    x_folded = x.reshape(R, FOLD * INPUT_DIM)      # row-major, metadata-only

    # Tiny block-diagonal weights (built / constant-folded under jit), bf16 MXU
    # operands; biases stay f32 for the f32 accumulator path.
    w1_blk = _block_diag(w1, FOLD).astype(jnp.bfloat16)            # (108, 256)
    w2_blk = _block_diag(w2, FOLD).astype(jnp.bfloat16)            # (256, 128)
    b1_blk = jnp.tile(b1.reshape(1, HIDDEN_DIM), (1, FOLD))        # (1, 256)
    b2_blk = jnp.tile(b2.reshape(1, EMBEDDING_DIM), (1, FOLD))     # (1, 128)

    # Big tiles amortise per-step overhead; clamp to ceil(R/2) so the grid has
    # >=2 steps for v7x megacore; 4096 folded rows keeps double-buffered VMEM
    # ~8 MiB (safe under v5e's 16 MiB scoped default).
    tile_r = min(DEFAULT_TILE_R, max(8, _round_up((R + 1) // 2, 8)))
    grid = (pl.cdiv(R, tile_r),)   # ragged last block masked by Pallas

    kf = FOLD * INPUT_DIM        # 108
    nh = FOLD * HIDDEN_DIM       # 256
    ne = FOLD * EMBEDDING_DIM    # 128

    cost = pl.CostEstimate(
        flops=2 * R * (kf * nh + nh * ne),
        transcendentals=0,
        bytes_accessed=(R * kf * 4                 # x stream (f32)
                        + R * ne * 4               # output (f32)
                        + (kf * nh + nh * ne) * 2  # weights (bf16)
                        + (nh + ne) * 4),          # biases (f32)
    )

    out_folded = pl.pallas_call(
        embedding_net_kernel,
        out_shape=jax.ShapeDtypeStruct((R, ne), jnp.float32),
        grid=grid,
        in_specs=[
            # Batch-tiled input stream; double-buffered by Pallas.
            pl.BlockSpec((tile_r, kf), lambda i: (i, 0)),
            # Weights/biases: constant index_map -> VMEM-resident across steps.
            pl.BlockSpec((kf, nh), lambda i: (0, 0)),
            pl.BlockSpec((1, nh), lambda i: (0, 0)),
            pl.BlockSpec((nh, ne), lambda i: (0, 0)),
            pl.BlockSpec((1, ne), lambda i: (0, 0)),
        ],
        out_specs=pl.BlockSpec((tile_r, ne), lambda i: (i, 0)),
        compiler_params=pltpu.CompilerParams(
            dimension_semantics=("parallel",),      # megacore sharding on v7x
        ),
        cost_estimate=cost,
    )(x_folded, w1_blk, b1_blk, w2_blk, b2_blk)

    # Unfold (free reshape) and drop padded rows; fuses under jit.
    return out_folded.reshape(B_pad, EMBEDDING_DIM)[:B]


def init_params(key):
    """Deterministic init mimicking PyTorch nn.Linear default (+/- 1/sqrt(fan_in))."""
    k1, k2, k3, k4 = jax.random.split(key, 4)
    bound1 = 1.0 / jnp.sqrt(jnp.float32(INPUT_DIM))
    bound2 = 1.0 / jnp.sqrt(jnp.float32(HIDDEN_DIM))
    w1 = jax.random.uniform(k1, (INPUT_DIM, HIDDEN_DIM), jnp.float32, -bound1, bound1)
    b1 = jax.random.uniform(k2, (1, HIDDEN_DIM), jnp.float32, -bound1, bound1)
    w2 = jax.random.uniform(k3, (HIDDEN_DIM, EMBEDDING_DIM), jnp.float32, -bound2, bound2)
    b2 = jax.random.uniform(k4, (1, EMBEDDING_DIM), jnp.float32, -bound2, bound2)
    return w1, b1, w2, b2


def reference_forward(x, w1, b1, w2, b2):
    h = jnp.maximum(x @ w1 + b1, 0.0)
    return h @ w2 + b2


if __name__ == "__main__":
    key = jax.random.PRNGKey(0)
    k_params, k_x1, k_x2 = jax.random.split(key, 3)
    w1, b1, w2, b2 = init_params(k_params)

    # Small batch (8 rows -> padded to 32 folded rows, single grid step).
    batch_small = 8
    x_small = jax.random.normal(k_x1, (batch_small, INPUT_DIM), jnp.float32)
    out_small = jax.block_until_ready(embedding_net_forward(x_small, w1, b1, w2, b2))
    ref_small = reference_forward(x_small, w1, b1, w2, b2)
    assert out_small.shape == (batch_small, EMBEDDING_DIM)
    # bf16 matmul operands -> loosened tolerance vs the f32 reference.
    assert jnp.allclose(out_small, ref_small, atol=3e-2, rtol=3e-2), \
        "Pallas kernel mismatch vs reference (small batch)"

    # Ragged batch: exercises pad-to-32, row folding, multi-step grid and the
    # Pallas-masked partial last block.
    batch_big = 515
    x_big = jax.random.normal(k_x2, (batch_big, INPUT_DIM), jnp.float32)
    out_big = jax.block_until_ready(embedding_net_forward(x_big, w1, b1, w2, b2))
    ref_big = reference_forward(x_big, w1, b1, w2, b2)
    assert out_big.shape == (batch_big, EMBEDDING_DIM)
    assert jnp.allclose(out_big, ref_big, atol=3e-2, rtol=3e-2), \
        "Pallas kernel mismatch vs reference (ragged batch)"

    print("KERNEL_OK")
</pallas_src>

<mosaic_0001>
module attributes {stable_mosaic.version = 11 : i64} {
  func.func @embedding_net_kernel(%arg0: i32, %arg1: memref<8x108xf32, #tpu.memory_space<vmem>>, %arg2: memref<108x256xbf16, #tpu.memory_space<vmem>>, %arg3: memref<1x256xf32, #tpu.memory_space<vmem>>, %arg4: memref<256x128xbf16, #tpu.memory_space<vmem>>, %arg5: memref<1x128xf32, #tpu.memory_space<vmem>>, %arg6: memref<8x128xf32, #tpu.memory_space<vmem>>) attributes {dimension_semantics = [#tpu.dimension_semantics<parallel>], iteration_bounds = array<i64: 1>, scalar_prefetch = 0 : i64, scratch_operands = 0 : i64, tpu.core_type = #tpu.core_type<tc>, window_params = [{transform_indices = @transform_0, window_bounds = array<i64: 8, 108>}, {pipeline_mode = #tpu.pipeline_mode<synchronous>, transform_indices = @transform_1, window_bounds = array<i64: 108, 256>}, {pipeline_mode = #tpu.pipeline_mode<synchronous>, transform_indices = @transform_2, window_bounds = array<i64: 1, 256>}, {pipeline_mode = #tpu.pipeline_mode<synchronous>, transform_indices = @transform_3, window_bounds = array<i64: 256, 128>}, {pipeline_mode = #tpu.pipeline_mode<synchronous>, transform_indices = @transform_4, window_bounds = array<i64: 1, 128>}, {transform_indices = @transform_5, window_bounds = array<i64: 8, 128>}]} {
    %c0 = arith.constant 0 : index
    %c0_0 = arith.constant 0 : index
    %0 = vector.load %arg1[%c0, %c0_0] : memref<8x108xf32, #tpu.memory_space<vmem>>, vector<8x108xf32>
    %1 = arith.truncf %0 : vector<8x108xf32> to vector<8x108xbf16>
    %c0_1 = arith.constant 0 : index
    %c0_2 = arith.constant 0 : index
    %2 = vector.load %arg2[%c0_1, %c0_2] : memref<108x256xbf16, #tpu.memory_space<vmem>>, vector<108x256xbf16>
    %cst = arith.constant dense<0.000000e+00> : vector<8x256xf32>
    %3 = tpu.matmul %1, %2, %cst {dimension_numbers = #tpu.dot_dimension_numbers<[1], [0], [0], [1], [0, 0, 1, 1], [], []>} : vector<8x108xbf16>, vector<108x256xbf16>, vector<8x256xf32> -> vector<8x256xf32>
    %c0_3 = arith.constant 0 : index
    %c0_4 = arith.constant 0 : index
    %4 = vector.load %arg3[%c0_3, %c0_4] : memref<1x256xf32, #tpu.memory_space<vmem>>, vector<1x256xf32>
    %5 = vector.broadcast %4 : vector<1x256xf32> to vector<8x256xf32>
    %6 = arith.addf %3, %5 : vector<8x256xf32>
    %cst_5 = arith.constant 0.000000e+00 : f32
    %7 = vector.broadcast %cst_5 : f32 to vector<8x256xf32>
    %8 = arith.maximumf %6, %7 : vector<8x256xf32>
    %9 = arith.truncf %8 : vector<8x256xf32> to vector<8x256xbf16>
    %c0_6 = arith.constant 0 : index
    %c0_7 = arith.constant 0 : index
    %10 = vector.load %arg4[%c0_6, %c0_7] : memref<256x128xbf16, #tpu.memory_space<vmem>>, vector<256x128xbf16>
    %cst_8 = arith.constant dense<0.000000e+00> : vector<8x128xf32>
    %11 = tpu.matmul %9, %10, %cst_8 {dimension_numbers = #tpu.dot_dimension_numbers<[1], [0], [0], [1], [0, 0, 1, 1], [], []>} : vector<8x256xbf16>, vector<256x128xbf16>, vector<8x128xf32> -> vector<8x128xf32>
    %c0_9 = arith.constant 0 : index
    %c0_10 = arith.constant 0 : index
    %12 = vector.load %arg5[%c0_9, %c0_10] : memref<1x128xf32, #tpu.memory_space<vmem>>, vector<1x128xf32>
    %13 = vector.broadcast %12 : vector<1x128xf32> to vector<8x128xf32>
    %14 = arith.addf %11, %13 : vector<8x128xf32>
    %c0_11 = arith.constant 0 : index
    %c0_12 = arith.constant 0 : index
    %15 = vector.load %arg6[%c0_11, %c0_12] : memref<8x128xf32, #tpu.memory_space<vmem>>, vector<8x128xf32>
    tpu.vector_store %arg6[%c0_11, %c0_12], %14 {strides = array<i32>} : memref<8x128xf32, #tpu.memory_space<vmem>>, vector<8x128xf32>,
    return
  }
  func.func @transform_0(%arg0: i32) -> (i32, i32) {
    %c0_i32 = arith.constant 0 : i32
    %c0_i32_0 = arith.constant 0 : i32
    return %arg0, %c0_i32 : i32, i32
  }
  func.func @transform_1(%arg0: i32) -> (i32, i32) {
    %c0_i32 = arith.constant 0 : i32
    %c0_i32_0 = arith.constant 0 : i32
    %c0_i32_1 = arith.constant 0 : i32
    return %c0_i32, %c0_i32_0 : i32, i32
  }
  func.func @transform_2(%arg0: i32) -> (i32, i32) {
    %c0_i32 = arith.constant 0 : i32
    %c0_i32_0 = arith.constant 0 : i32
    %c0_i32_1 = arith.constant 0 : i32
    return %c0_i32, %c0_i32_0 : i32, i32
  }
  func.func @transform_3(%arg0: i32) -> (i32, i32) {
    %c0_i32 = arith.constant 0 : i32
    %c0_i32_0 = arith.constant 0 : i32
    %c0_i32_1 = arith.constant 0 : i32
    return %c0_i32, %c0_i32_0 : i32, i32
  }
  func.func @transform_4(%arg0: i32) -> (i32, i32) {
    %c0_i32 = arith.constant 0 : i32
    %c0_i32_0 = arith.constant 0 : i32
    %c0_i32_1 = arith.constant 0 : i32
    return %c0_i32, %c0_i32_0 : i32, i32
  }
  func.func @transform_5(%arg0: i32) -> (i32, i32) {
    %c0_i32 = arith.constant 0 : i32
    %c0_i32_0 = arith.constant 0 : i32
    return %arg0, %c0_i32 : i32, i32
  }
}

</mosaic_0001>

<llo_original>
// kernel: embedding_net_forward.1
$region0: #{embedding_net_forward.1}
  #allocation0 [shape = 'u32[]', space=smem, size = 0x4, offset = 0x4, fixed_abs, tag = 'smem constant byte address 0x4 - core index']
  #allocation1 [shape = 'u32[144,128]{1,0:T(1,128)}', space=vmem, size = 0x12000, scoped, tag = 'internal scratch']
  %s0 = inlined_call_operand.vmem [shape: f32[8,108], index: 0, kind: input, shape index: {}]
  %s1 = inlined_call_operand.vmem [shape: bf16[108,256], index: 1, kind: input, shape index: {}]
  %s2 = inlined_call_operand.vmem [shape: f32[1,256], index: 2, kind: input, shape index: {}]
  %s3 = inlined_call_operand.vmem [shape: bf16[256,128], index: 3, kind: input, shape index: {}]
  %s4 = inlined_call_operand.vmem [shape: f32[1,128], index: 4, kind: input, shape index: {}]
  %s5 = inlined_call_operand.vmem [shape: f32[8,128], index: 5, kind: output, shape index: {}]
  %s6 = sld [smem:[#allocation0]]
  $region30: #{embedding_net_forward.1} parent=0
    _
  %s8 = ssub.s32 1, %s6
  %s9 = scalar_select 0, %s8, %s6
  // Predicated region
  $region2: #{embedding_net_forward.1} parent=0 // pred_check
    _
  $region3: #{embedding_net_forward.1} parent=0 // pred_check_branch
    %11 = sbr.rel (0) target = $region5
  $region4: #{embedding_net_forward.1} parent=0 // pred_region
    _
  $region5: #{embedding_net_forward.1} parent=0 // pred_fallthru
    _
  // Predicated region
  $region6: #{embedding_net_forward.1} parent=0 // pred_check
    _
  $region7: #{embedding_net_forward.1} parent=0 // pred_check_branch
    %13 = sbr.rel (0) target = $region9
  $region8: #{embedding_net_forward.1} parent=0 // pred_region
    _
  $region9: #{embedding_net_forward.1} parent=0 // pred_fallthru
    _
  // Predicated region
  $region10: #{embedding_net_forward.1} parent=0 // pred_check
    _
  $region11: #{embedding_net_forward.1} parent=0 // pred_check_branch
    %15 = sbr.rel (0) target = $region13
  $region12: #{embedding_net_forward.1} parent=0 // pred_region
    _
  $region13: #{embedding_net_forward.1} parent=0 // pred_fallthru
    _
  // Predicated region
  $region14: #{embedding_net_forward.1} parent=0 // pred_check
    _
  $region15: #{embedding_net_forward.1} parent=0 // pred_check_branch
    %17 = sbr.rel (0) target = $region17
  $region16: #{embedding_net_forward.1} parent=0 // pred_region
    _
  $region17: #{embedding_net_forward.1} parent=0 // pred_fallthru
    _
  // Predicated region
  $region18: #{embedding_net_forward.1} parent=0 // pred_check
    _
  $region19: #{embedding_net_forward.1} parent=0 // pred_check_branch
    %19 = sbr.rel (0) target = $region21
  $region20: #{embedding_net_forward.1} parent=0 // pred_region
    _
  $region21: #{embedding_net_forward.1} parent=0 // pred_fallthru
    _
  %v21 = vld [vmem:[%s0] sm:$0xff]
  %v22 = vpack.c.bf16 %v21, %v21
  %v23 = vld [vmem:[%s1] sm:$0xff]
  %v24 = vld [vmem:[%s1 + $0x8] sm:$0xff]
  %v25 = vld [vmem:[%s1 + $0x10] sm:$0xff]
  %v26 = vld [vmem:[%s1 + $0x18] sm:$0xff]
  %v27 = vld [vmem:[%s1 + $0x20] sm:$0xff]
  %v28 = vld [vmem:[%s1 + $0x28] sm:$0xff]
  %v29 = vld [vmem:[%s1 + $0x30] sm:$0xff]
  %v30 = vld [vmem:[%s1 + $0x38] sm:$0xff]
  %v31 = vld [vmem:[%s1 + $0x40] sm:$0xff]
  %v32 = vld [vmem:[%s1 + $0x48] sm:$0xff]
  %v33 = vld [vmem:[%s1 + $0x50] sm:$0xff]
  %v34 = vld [vmem:[%s1 + $0x58] sm:$0xff]
  %v35 = vld [vmem:[%s1 + $0x60] sm:$0xff]
  %v36 = vld [vmem:[%s1 + $0x68] sm:$0x33]
  %v37 = vld [vmem:[%s2] sm:$0x3]
  %v39 = vlaneseq
  %v40 = vshrl.u32 %v39, 7
  %v41 = vsub.s32 0, %v40
  %v42 = vrot.slane %v37, %v41
  %v43 = vlaneseq
  %v44 = vshrl.u32 %v43, 7
  %v45 = vsub.s32 1, %v44
  %v46 = vrot.slane %v37, %v45
  %v63 = vunpack.c.l.b16 %v23
  %v64 = vunpack.c.h.b16 %v23
  %v65 = vunpack.c.l.b16 %v24
  %v66 = vunpack.c.h.b16 %v24
  %v67 = vunpack.c.l.b16 %v25
  %v68 = vunpack.c.h.b16 %v25
  %v69 = vunpack.c.l.b16 %v26
  %v70 = vunpack.c.h.b16 %v26
  %v71 = vunpack.c.l.b16 %v27
  %v72 = vunpack.c.h.b16 %v27
  %v73 = vunpack.c.l.b16 %v28
  %v74 = vunpack.c.h.b16 %v28
  %v75 = vunpack.c.l.b16 %v29
  %v76 = vunpack.c.h.b16 %v29
  %v77 = vunpack.c.l.b16 %v30
  %v78 = vunpack.c.h.b16 %v30
  %v79 = vunpack.c.l.b16 %v31
  %v80 = vunpack.c.h.b16 %v31
  %v81 = vunpack.c.l.b16 %v32
  %v82 = vunpack.c.h.b16 %v32
  %v83 = vunpack.c.l.b16 %v33
  %v84 = vunpack.c.h.b16 %v33
  %v85 = vunpack.c.l.b16 %v34
  %v86 = vunpack.c.h.b16 %v34
  %v87 = vunpack.c.l.b16 %v35
  %v88 = vunpack.c.h.b16 %v35
  %v89 = vunpack.c.l.b16 %v36
  %v90 = vunpack.c.h.b16 %v36
  %v91 = vpack.c.b16 %v65, %v63
  %v92 = vpack.c.b16 %v66, %v64
  %v93 = vpack.c.b16 %v69, %v67
  %v94 = vpack.c.b16 %v70, %v68
  %v95 = vpack.c.b16 %v73, %v71
  %v96 = vpack.c.b16 %v74, %v72
  %v97 = vpack.c.b16 %v77, %v75
  %v98 = vpack.c.b16 %v78, %v76
  %v99 = vpack.c.b16 %v81, %v79
  %v100 = vpack.c.b16 %v82, %v80
  %v101 = vpack.c.b16 %v85, %v83
  %v102 = vpack.c.b16 %v86, %v84
  %v103 = vpack.c.b16 %v89, %v87
  %v104 = vpack.c.b16 %v90, %v88
  %vm117 = vcmask 883712
  %v119 = vsel %vm117, %v22, 0
  %vm121 = vcmask 1045504
  %v123 = vsel %vm121, %v103, 0
  %v126 = vsel %vm121, %v104, 0
  %128 = vmatprep.subr.bf16.mxu0 0
  %129 = vmatpush1.bf16.msra.mxu0 0
  %130 = vmatprep.subr.bf16.mxu0 %v126
  %131 = vmatpush1.bf16.msra.mxu0 %v123
  %132 = vmatprep.subr.bf16.mxu0 %v102
  %133 = vmatpush1.bf16.msra.mxu0 %v101
  %134 = vmatprep.subr.bf16.mxu0 %v100
  %135 = vmatpush1.bf16.msra.mxu0 %v99
  %136 = vmatprep.subr.bf16.mxu0 %v98
  %137 = vmatpush1.bf16.msra.mxu0 %v97
  %138 = vmatprep.subr.bf16.mxu0 %v96
  %139 = vmatpush1.bf16.msra.mxu0 %v95
  %140 = vmatprep.subr.bf16.mxu0 %v94
  %141 = vmatpush1.bf16.msra.mxu0 %v93
  %142 = vmatprep.subr.bf16.mxu0 %v92
  %143 = vmatpush1.bf16.msra.mxu0 %v91
  %144 = vmatprep.subr.bf16.mxu0 0
  %145 = vmatpush2.bf16.msra.mxu0 0
  %146 = vmatprep.subr.bf16.mxu0 0
  %147 = vmatpush2.bf16.msra.mxu0 0
  %148 = vmatprep.subr.bf16.mxu0 0
  %149 = vmatpush2.bf16.msra.mxu0 0
  %150 = vmatprep.subr.bf16.mxu0 0
  %151 = vmatpush2.bf16.msra.mxu0 0
  %152 = vmatprep.subr.bf16.mxu0 0
  %153 = vmatpush2.bf16.msra.mxu0 0
  %154 = vmatprep.subr.bf16.mxu0 0
  %155 = vmatpush2.bf16.msra.mxu0 0
  %156 = vmatprep.subr.bf16.mxu0 0
  %157 = vmatpush2.bf16.msra.mxu0 0
  %158 = vmatprep.subr.bf16.mxu0 0
  %159 = vmatpush2.bf16.msra.mxu0 0
  %160 = vmatprep.mubr.bf16.mxu0 0
  %161 = vmatmul.mubr.bf16.gmra.mxu0 %v119
  %v162 = vpop.f32.mrf.mxu0
  %v163 = vadd.f32 %v42, %v162
  %v164 = vpop.f32.mrf.mxu0
  %v165 = vadd.f32 %v46, %v164
  %v166 = vpop.f32.mrf.mxu0
  %v167 = vpop.f32.mrf.mxu0
  %168 = vdwg.mxu0
  %v169 = vmax.f32 %v163, 0.0
  %v170 = vmax.f32 %v165, 0.0
  %v171 = vpack.c.bf16 %v169, %v169
  %v172 = vpack.c.bf16 %v170, %v170
  %v173 = vld [vmem:[%s3] sm:$0xf]
  %v174 = vld [vmem:[%s3 + $0x4] sm:$0xf]
  %v175 = vld [vmem:[%s3 + $0x8] sm:$0xf]
  %v176 = vld [vmem:[%s3 + $0xc] sm:$0xf]
  %v177 = vld [vmem:[%s3 + $0x10] sm:$0xf]
  %v178 = vld [vmem:[%s3 + $0x14] sm:$0xf]
  %v179 = vld [vmem:[%s3 + $0x18] sm:$0xf]
  %v180 = vld [vmem:[%s3 + $0x1c] sm:$0xf]
  %v181 = vld [vmem:[%s3 + $0x20] sm:$0xf]
  %v182 = vld [vmem:[%s3 + $0x24] sm:$0xf]
  %v183 = vld [vmem:[%s3 + $0x28] sm:$0xf]
  %v184 = vld [vmem:[%s3 + $0x2c] sm:$0xf]
  %v185 = vld [vmem:[%s3 + $0x30] sm:$0xf]
  %v186 = vld [vmem:[%s3 + $0x34] sm:$0xf]
  %v187 = vld [vmem:[%s3 + $0x38] sm:$0xf]
  %v188 = vld [vmem:[%s3 + $0x3c] sm:$0xf]
  %v189 = vld [vmem:[%s3 + $0x40] sm:$0xf]
  %v190 = vld [vmem:[%s3 + $0x44] sm:$0xf]
  %v191 = vld [vmem:[%s3 + $0x48] sm:$0xf]
  %v192 = vld [vmem:[%s3 + $0x4c] sm:$0xf]
  %v193 = vld [vmem:[%s3 + $0x50] sm:$0xf]
  %v194 = vld [vmem:[%s3 + $0x54] sm:$0xf]
  %v195 = vld [vmem:[%s3 + $0x58] sm:$0xf]
  %v196 = vld [vmem:[%s3 + $0x5c] sm:$0xf]
  %v197 = vld [vmem:[%s3 + $0x60] sm:$0xf]
  %v198 = vld [vmem:[%s3 + $0x64] sm:$0xf]
  %v199 = vld [vmem:[%s3 + $0x68] sm:$0xf]
  %v200 = vld [vmem:[%s3 + $0x6c] sm:$0xf]
  %v201 = vld [vmem:[%s3 + $0x70] sm:$0xf]
  %v202 = vld [vmem:[%s3 + $0x74] sm:$0xf]
  %v203 = vld [vmem:[%s3 + $0x78] sm:$0xf]
  %v204 = vld [vmem:[%s3 + $0x7c] sm:$0xf]
  %v205 = vld [vmem:[%s4] sm:$0x1]
  %v207 = vlaneseq
  %v208 = vshrl.u32 %v207, 7
  %v209 = vsub.s32 0, %v208
  %v210 = vrot.slane %v205, %v209
  %v244 = vunpack.c.l.b16 %v173
  %v245 = vunpack.c.l.b16 %v174
  %v246 = vunpack.c.l.b16 %v175
  %v247 = vunpack.c.l.b16 %v176
  %v248 = vunpack.c.l.b16 %v177
  %v249 = vunpack.c.l.b16 %v178
  %v250 = vunpack.c.l.b16 %v179
  %v251 = vunpack.c.l.b16 %v180
  %v252 = vunpack.c.l.b16 %v181
  %v253 = vunpack.c.l.b16 %v182
  %v254 = vunpack.c.l.b16 %v183
  %v255 = vunpack.c.l.b16 %v184
  %v256 = vunpack.c.l.b16 %v185
  %v257 = vunpack.c.l.b16 %v186
  %v258 = vunpack.c.l.b16 %v187
  %v259 = vunpack.c.l.b16 %v188
  %v260 = vunpack.c.l.b16 %v189
  %v261 = vunpack.c.l.b16 %v190
  %v262 = vunpack.c.l.b16 %v191
  %v263 = vunpack.c.l.b16 %v192
  %v264 = vunpack.c.l.b16 %v193
  %v265 = vunpack.c.l.b16 %v194
  %v266 = vunpack.c.l.b16 %v195
  %v267 = vunpack.c.l.b16 %v196
  %v268 = vunpack.c.l.b16 %v197
  %v269 = vunpack.c.l.b16 %v198
  %v270 = vunpack.c.l.b16 %v199
  %v271 = vunpack.c.l.b16 %v200
  %v272 = vunpack.c.l.b16 %v201
  %v273 = vunpack.c.l.b16 %v202
  %v274 = vunpack.c.l.b16 %v203
  %v275 = vunpack.c.l.b16 %v204
  %v276 = vpack.c.b16 %v245, %v244
  %v277 = vpack.c.b16 %v247, %v246
  %v278 = vpack.c.b16 %v249, %v248
  %v279 = vpack.c.b16 %v251, %v250
  %v280 = vpack.c.b16 %v253, %v252
  %v281 = vpack.c.b16 %v255, %v254
  %v282 = vpack.c.b16 %v257, %v256
  %v283 = vpack.c.b16 %v259, %v258
  %v284 = vpack.c.b16 %v261, %v260
  %v285 = vpack.c.b16 %v263, %v262
  %v286 = vpack.c.b16 %v265, %v264
  %v287 = vpack.c.b16 %v267, %v266
  %v288 = vpack.c.b16 %v269, %v268
  %v289 = vpack.c.b16 %v271, %v270
  %v290 = vpack.c.b16 %v273, %v272
  %v291 = vpack.c.b16 %v275, %v274
  %308 = vmatprep.subr.bf16.mxu0 0
  %309 = vmatpush1.bf16.msra.mxu0 %v283
  %310 = vmatprep.subr.bf16.mxu0 0
  %311 = vmatpush1.bf16.msra.mxu0 %v282
  %312 = vmatprep.subr.bf16.mxu0 0
  %313 = vmatpush1.bf16.msra.mxu0 %v281
  %314 = vmatprep.subr.bf16.mxu0 0
  %315 = vmatpush1.bf16.msra.mxu0 %v280
  %316 = vmatprep.subr.bf16.mxu0 0
  %317 = vmatpush1.bf16.msra.mxu0 %v279
  %318 = vmatprep.subr.bf16.mxu0 0
  %319 = vmatpush1.bf16.msra.mxu0 %v278
  %320 = vmatprep.subr.bf16.mxu0 0
  %321 = vmatpush1.bf16.msra.mxu0 %v277
  %322 = vmatprep.subr.bf16.mxu0 0
  %323 = vmatpush1.bf16.msra.mxu0 %v276
  %324 = vmatprep.subr.bf16.mxu0 0
  %325 = vmatpush2.bf16.msra.mxu0 %v291
  %326 = vmatprep.subr.bf16.mxu0 0
  %327 = vmatpush2.bf16.msra.mxu0 %v290
  %328 = vmatprep.subr.bf16.mxu0 0
  %329 = vmatpush2.bf16.msra.mxu0 %v289
  %330 = vmatprep.subr.bf16.mxu0 0
  %331 = vmatpush2.bf16.msra.mxu0 %v288
  %332 = vmatprep.subr.bf16.mxu0 0
  %333 = vmatpush2.bf16.msra.mxu0 %v287
  %334 = vmatprep.subr.bf16.mxu0 0
  %335 = vmatpush2.bf16.msra.mxu0 %v286
  %336 = vmatprep.subr.bf16.mxu0 0
  %337 = vmatpush2.bf16.msra.mxu0 %v285
  %338 = vmatprep.subr.bf16.mxu0 0
  %339 = vmatpush2.bf16.msra.mxu0 %v284
  %340 = vmatprep.mubr.bf16.mxu0 %v172
  %341 = vmatmul.mubr.bf16.gmra.mxu0 %v171
  %v342 = vpop.f32.mrf.mxu0
  %v343 = vadd.f32 %v210, %v342
  %v344 = vpop.f32.mrf.mxu0
  %v345 = vpop.f32.mrf.mxu0
  %v346 = vpop.f32.mrf.mxu0
  %347 = vdwg.mxu0
  %348 = vst [vmem:[%s5] sm:$0xff] %v343
  // Predicated region
  $region22: #{embedding_net_forward.1} parent=0 // pred_check
    _
  $region23: #{embedding_net_forward.1} parent=0 // pred_check_branch
    %350 = sbr.rel (0) target = $region25
  $region24: #{embedding_net_forward.1} parent=0 // pred_region
    _
  $region25: #{embedding_net_forward.1} parent=0 // pred_fallthru
    _
  // Predicated region
  $region26: #{embedding_net_forward.1} parent=0 // pred_check
    _
  $region27: #{embedding_net_forward.1} parent=0 // pred_check_branch
    %352 = sbr.rel (0) target = $region29
  $region28: #{embedding_net_forward.1} parent=0 // pred_region
    _
  $region29: #{embedding_net_forward.1} parent=0 // pred_fallthru
    _

</llo_original>
